<compile_context>
chip_gen: v6e
topology: v6e:2x2x1
jax: 0.10.0
libtpu: 0.0.40
codegen_flags: <defaults>
</compile_context>

<pallas_src>
import math

import jax
import jax.numpy as jnp
from jax.experimental import pallas as pl
from jax.experimental.pallas import tpu as pltpu

_LANES = 128                       # lane-dense last dim -> unmasked vector stores
_MAX_ROW_TILE = 8192               # (8192,128) f32 = 4 MiB per operand tile
_VMEM_LIMIT_BYTES = 40 * 1024 * 1024   # 3 ops x 2 bufs x 4 MiB = 24 MiB + slack;
                                       # < physical VMEM on v5e/v6e (128 MiB) and v7x (64 MiB)
_MIN_KERNEL_BYTES = 1 << 20        # below ~1 MiB, plain fused XLA is already at roofline


def _round_up(x: int, m: int) -> int:
    return ((x + m - 1) // m) * m


def _blend_kernel(alpha_ref, i_ref, d_ref, o_ref):
    # alpha_ref: SMEM (1,) f32; i_ref/d_ref/o_ref: VMEM (row_tile, 128) tiles.
    alpha = alpha_ref[0]
    i = i_ref[...].astype(jnp.float32)   # no-op for f32 inputs
    d = d_ref[...].astype(jnp.float32)
    # o = alpha*i + (1-alpha)*d  ==  d + alpha*(i - d)   (one VPU mul saved)
    o_ref[...] = (d + alpha * (i - d)).astype(o_ref.dtype)


def _blend_2d(alpha1: jax.Array, i2: jax.Array, d2: jax.Array) -> jax.Array:
    """Run the Pallas kernel on a lane-dense (rows, 128) slab."""
    rows = i2.shape[0]

    if rows <= 16:
        # Too small to split usefully; single full-slab step.
        row_tile = rows
    else:
        # At least 2 grid steps so both v7x TensorCores get work, capped at
        # _MAX_ROW_TILE to amortize the ~0.35us per-step overhead while the
        # double-buffered tiles still fit VMEM on every generation.
        row_tile = min(_MAX_ROW_TILE, _round_up(pl.cdiv(rows, 2), 8))
    grid = (pl.cdiv(rows, row_tile),)

    n = rows * _LANES
    itemsize = jnp.dtype(i2.dtype).itemsize
    cost = pl.CostEstimate(flops=3 * n, transcendentals=0,
                           bytes_accessed=3 * n * itemsize)

    return pl.pallas_call(
        _blend_kernel,
        out_shape=jax.ShapeDtypeStruct((rows, _LANES), i2.dtype),
        grid=grid,
        in_specs=[
            # alpha: single scalar parameter, kept in SMEM.
            pl.BlockSpec(memory_space=pltpu.MemorySpace.SMEM),
            # I and D: lane-dense row tiles, auto-pipelined (double-buffered).
            pl.BlockSpec((row_tile, _LANES), lambda i: (i, 0)),
            pl.BlockSpec((row_tile, _LANES), lambda i: (i, 0)),
        ],
        out_specs=pl.BlockSpec((row_tile, _LANES), lambda i: (i, 0)),
        compiler_params=pltpu.CompilerParams(
            dimension_semantics=("parallel",),
            vmem_limit_bytes=_VMEM_LIMIT_BYTES,
        ),
        cost_estimate=cost,
    )(alpha1, i2, d2)


def mlp2_forward(alpha: jax.Array, I: jax.Array, D: jax.Array,
                 *, min_kernel_bytes: int = _MIN_KERNEL_BYTES) -> jax.Array:
    assert I.shape == D.shape and I.dtype == D.dtype
    shape = I.shape
    n = math.prod(shape)

    # Scalar parameter -> f32 (1,) for SMEM.
    alpha = jnp.asarray(alpha, dtype=jnp.float32).reshape(-1)
    a = alpha[0]

    itemsize = jnp.dtype(I.dtype).itemsize
    # Tiny inputs: skip the custom-call boundary; an XLA-fused elementwise op
    # is already at the HBM roofline.  (Also used when there is not even one
    # full 128-lane row of data.)
    if n * itemsize < min_kernel_bytes or n < _LANES:
        return (D + a * (I - D)).astype(I.dtype)

    i_flat = I.reshape(-1)          # free reshapes (contiguous)
    d_flat = D.reshape(-1)

    n_main = (n // _LANES) * _LANES   # 128-aligned prefix handled by the kernel
    rows = n_main // _LANES

    if n_main == n:
        # Common case: zero extra HBM copies (no pad / slice round trips).
        out2 = _blend_2d(alpha,
                         i_flat.reshape(rows, _LANES),
                         d_flat.reshape(rows, _LANES))
        return out2.reshape(shape)

    # Ragged size: kernel on the 128-aligned prefix, <=127-element tail in
    # plain jnp, stitch the result.  Avoids the previous full-array pad +
    # output-slice copies.
    out_main = _blend_2d(alpha,
                         i_flat[:n_main].reshape(rows, _LANES),
                         d_flat[:n_main].reshape(rows, _LANES)).reshape(-1)
    i_tail = i_flat[n_main:]
    d_tail = d_flat[n_main:]
    out_tail = (d_tail + a * (i_tail - d_tail)).astype(I.dtype)
    return jnp.concatenate([out_main, out_tail]).reshape(shape)


if __name__ == "__main__":
    key = jax.random.PRNGKey(0)
    k_i, k_d = jax.random.split(key)

    # Deterministic parameter init, matching nn.Parameter(torch.Tensor([0.6]))
    alpha = jnp.array([0.6], dtype=jnp.float32)

    # Small NCHW inputs consistent with an elementwise blend of two images.
    I = jax.random.normal(k_i, (2, 4, 16, 16), dtype=jnp.float32)
    D = jax.random.normal(k_d, (2, 4, 16, 16), dtype=jnp.float32)

    def ref_fn(a, x, y):
        return a[0] * x + (1.0 - a[0]) * y

    # 1) Force the Pallas kernel path on the module-consistent small shape.
    out = mlp2_forward(alpha, I, D, min_kernel_bytes=0)
    jax.block_until_ready(out)
    assert out.shape == I.shape and out.dtype == I.dtype
    assert jnp.allclose(out, ref_fn(alpha, I, D), atol=1e-6), "kernel mismatch"

    # 2) Default path: tiny input takes the plain-jnp fast path.
    out_small = mlp2_forward(alpha, I, D)
    jax.block_until_ready(out_small)
    assert jnp.allclose(out_small, ref_fn(alpha, I, D), atol=1e-6), "fallback mismatch"

    # 3) Ragged size (n % 128 != 0): aligned prefix in Pallas + jnp tail.
    k_i2, k_d2 = jax.random.split(jax.random.PRNGKey(1))
    I2 = jax.random.normal(k_i2, (3, 5, 7, 11), dtype=jnp.float32)
    D2 = jax.random.normal(k_d2, (3, 5, 7, 11), dtype=jnp.float32)
    out2 = mlp2_forward(alpha, I2, D2, min_kernel_bytes=0)
    jax.block_until_ready(out2)
    assert jnp.allclose(out2, ref_fn(alpha, I2, D2), atol=1e-6), "ragged mismatch"

    # 4) Multi-step parallel grid (rows > 16), still a small absolute size.
    k_i3, k_d3 = jax.random.split(jax.random.PRNGKey(2))
    I3 = jax.random.normal(k_i3, (2, 4, 64, 64), dtype=jnp.float32)
    D3 = jax.random.normal(k_d3, (2, 4, 64, 64), dtype=jnp.float32)
    out3 = mlp2_forward(alpha, I3, D3, min_kernel_bytes=0)
    jax.block_until_ready(out3)
    assert jnp.allclose(out3, ref_fn(alpha, I3, D3), atol=1e-6), "tiled mismatch"

    print("KERNEL_OK")
</pallas_src>

<mosaic_0001>
module attributes {stable_mosaic.version = 11 : i64} {
  func.func @_blend_kernel(%arg0: i32, %arg1: memref<1xf32, #tpu.memory_space<smem>>, %arg2: memref<16x128xf32, #tpu.memory_space<vmem>>, %arg3: memref<16x128xf32, #tpu.memory_space<vmem>>, %arg4: memref<16x128xf32, #tpu.memory_space<vmem>>) attributes {dimension_semantics = [#tpu.dimension_semantics<parallel>], iteration_bounds = array<i64: 1>, scalar_prefetch = 0 : i64, scratch_operands = 0 : i64, tpu.core_type = #tpu.core_type<tc>, window_params = [{transform_indices = @transform_0, window_bounds = array<i64: 1>}, {transform_indices = @transform_1, window_bounds = array<i64: 16, 128>}, {transform_indices = @transform_2, window_bounds = array<i64: 16, 128>}, {transform_indices = @transform_3, window_bounds = array<i64: 16, 128>}]} {
    %c0 = arith.constant 0 : index
    %0 = memref.load %arg1[%c0] : memref<1xf32, #tpu.memory_space<smem>>
    %c0_0 = arith.constant 0 : index
    %c0_1 = arith.constant 0 : index
    %1 = vector.load %arg2[%c0_0, %c0_1] : memref<16x128xf32, #tpu.memory_space<vmem>>, vector<16x128xf32>
    %c0_2 = arith.constant 0 : index
    %c0_3 = arith.constant 0 : index
    %2 = vector.load %arg3[%c0_2, %c0_3] : memref<16x128xf32, #tpu.memory_space<vmem>>, vector<16x128xf32>
    %3 = arith.subf %1, %2 : vector<16x128xf32>
    %4 = vector.broadcast %0 : f32 to vector<16x128xf32>
    %5 = arith.mulf %4, %3 : vector<16x128xf32>
    %6 = arith.addf %2, %5 : vector<16x128xf32>
    %c0_4 = arith.constant 0 : index
    %c0_5 = arith.constant 0 : index
    %7 = vector.load %arg4[%c0_4, %c0_5] : memref<16x128xf32, #tpu.memory_space<vmem>>, vector<16x128xf32>
    tpu.vector_store %arg4[%c0_4, %c0_5], %6 {strides = array<i32>} : memref<16x128xf32, #tpu.memory_space<vmem>>, vector<16x128xf32>,
    return
  }
  func.func @transform_0(%arg0: i32) -> i32 {
    %c0_i32 = arith.constant 0 : i32
    %c0_i32_0 = arith.constant 0 : i32
    return %c0_i32 : i32
  }
  func.func @transform_1(%arg0: i32) -> (i32, i32) {
    %c0_i32 = arith.constant 0 : i32
    %c0_i32_0 = arith.constant 0 : i32
    return %arg0, %c0_i32 : i32, i32
  }
  func.func @transform_2(%arg0: i32) -> (i32, i32) {
    %c0_i32 = arith.constant 0 : i32
    %c0_i32_0 = arith.constant 0 : i32
    return %arg0, %c0_i32 : i32, i32
  }
  func.func @transform_3(%arg0: i32) -> (i32, i32) {
    %c0_i32 = arith.constant 0 : i32
    %c0_i32_0 = arith.constant 0 : i32
    return %arg0, %c0_i32 : i32, i32
  }
}

</mosaic_0001>

<llo_original>
// kernel: tpu_custom_call.1
$region0: #{tpu_custom_call.1}
  #allocation0 [shape = 'u32[]', space=smem, size = 0x4, offset = 0x4, fixed_abs, tag = 'smem constant byte address 0x4 - core index']
  #allocation1 [shape = 'u32[144,128]{1,0:T(1,128)}', space=vmem, size = 0x12000, scoped, tag = 'internal scratch']
  #allocation2 [shape = 'f32[1]{0:T(128)S(6)}', space=smem, size = 0x200, scoped, tag = 'scoped memory for tpu_custom_call.1']
  %s0 = inlined_call_operand.<no memory space> [shape: f32[1], index: 0, kind: input, shape index: {}]
  %s1 = inlined_call_operand.hbm [shape: f32[16,128], index: 1, kind: input, shape index: {}]
  %s2 = inlined_call_operand.hbm [shape: f32[16,128], index: 2, kind: input, shape index: {}]
  %s3 = inlined_call_operand.hbm [shape: f32[16,128], index: 3, kind: output, shape index: {}]
  %s4 = sld [smem:[#allocation0]]
  $region30: #{tpu_custom_call.1} parent=0
    _
  %s6 = ssub.s32 1, %s4
  %s7 = scalar_select 0, %s6, %s4
  %8 = sst [smem:[#allocation2]] %s0
  $region1: #{tpu_custom_call.1} parent=0
    #allocation3 [shape = 'u8[8192]{0}', space=vmem, size = 0x2000, scoped, tag = 'input window, operand 1, single buffered']
    #allocation4 [shape = 's32[1]{0}', space=sflag, size = 0x4, scoped, tag = 'scoped memory for tpu_custom_call.1']
    #allocation5 [shape = 's32[1]{0}', space=sflag, size = 0x4, scoped, tag = 'scoped memory for tpu_custom_call.1']
    #allocation6 [shape = 'u8[8192]{0}', space=vmem, size = 0x2000, scoped, tag = 'input window, operand 2, single buffered']
    #allocation7 [shape = 's32[1]{0}', space=sflag, size = 0x4, scoped, tag = 'scoped memory for tpu_custom_call.1']
    #allocation8 [shape = 'u8[8192]{0}', space=vmem, size = 0x2000, scoped, tag = 'output window, operand 0, single buffered']
    %9 = vsyncpa [#allocation4], 0
    %10 = vsyncpa [#allocation7], 0
    %11 = vsyncpa [#allocation5], 0
    // Predicated region
    $region2: #{tpu_custom_call.1} parent=1 // pred_check
      _
    $region3: #{tpu_custom_call.1} parent=1 // pred_check_branch
      %13 = sbr.rel (0) target = $region5
    $region4: #{tpu_custom_call.1} parent=1 // pred_region
      _
    $region5: #{tpu_custom_call.1} parent=1 // pred_fallthru
      _
    // Predicated region
    $region6: #{tpu_custom_call.1} parent=1 // pred_check
      _
    $region7: #{tpu_custom_call.1} parent=1 // pred_check_branch
      %15 = sbr.rel (0) target = $region9
    $region8: #{tpu_custom_call.1} parent=1 // pred_region
      %s17 = ssub.s32 256, 256
      %18 = vsyncadd [#allocation4], %s17
      %s19 = sshll.u32 [#allocation3], 4
      %s20 = int_to_ptr.vmem [resolvable:$true] %s19
      %25 = dma.hbm_to_vmem [thread:$0]  %s1, 256, %s20, [#allocation4], 128, 128, 8
    $region9: #{tpu_custom_call.1} parent=1 // pred_fallthru
      _
    // Predicated region
    $region10: #{tpu_custom_call.1} parent=1 // pred_check
      _
    $region11: #{tpu_custom_call.1} parent=1 // pred_check_branch
      %27 = sbr.rel (0) target = $region13
    $region12: #{tpu_custom_call.1} parent=1 // pred_region
      %s29 = ssub.s32 256, 256
      %30 = vsyncadd [#allocation7], %s29
      %s31 = sshll.u32 [#allocation6], 4
      %s32 = int_to_ptr.vmem [resolvable:$true] %s31
      %37 = dma.hbm_to_vmem [thread:$0]  %s2, 256, %s32, [#allocation7], 128, 128, 8
    $region13: #{tpu_custom_call.1} parent=1 // pred_fallthru
      _
    // Predicated region
    $region14: #{tpu_custom_call.1} parent=1 // pred_check
      _
    $region15: #{tpu_custom_call.1} parent=1 // pred_check_branch
      %39 = sbr.rel (0) target = $region17
    $region16: #{tpu_custom_call.1} parent=1 // pred_region
      %40 = dma.done [#allocation4], 256
    $region17: #{tpu_custom_call.1} parent=1 // pred_fallthru
      _
    // Predicated region
    $region18: #{tpu_custom_call.1} parent=1 // pred_check
      _
    $region19: #{tpu_custom_call.1} parent=1 // pred_check_branch
      %42 = sbr.rel (0) target = $region21
    $region20: #{tpu_custom_call.1} parent=1 // pred_region
      %43 = dma.done [#allocation7], 256
    $region21: #{tpu_custom_call.1} parent=1 // pred_fallthru
      _
    %s44 = sld [smem:[#allocation2]]
    %v45 = vld [vmem:[#allocation3] sm:$0xff]
    %v46 = vld [vmem:[#allocation3 + $0x8] sm:$0xff]
    %v47 = vld [vmem:[#allocation6] sm:$0xff]
    %v48 = vld [vmem:[#allocation6 + $0x8] sm:$0xff]
    %v49 = vsub.f32 %v45, %v47
    %v50 = vsub.f32 %v46, %v48
    %v51 = vstv %s44
    %v52 = vmul.f32 %v51, %v49
    %v53 = vmul.f32 %v51, %v50
    %v54 = vadd.f32 %v47, %v52
    %v55 = vadd.f32 %v48, %v53
    %56 = vst [vmem:[#allocation8] sm:$0xff] %v54
    %57 = vst [vmem:[#allocation8 + $0x8] sm:$0xff] %v55
    // Predicated region
    $region22: #{tpu_custom_call.1} parent=1 // pred_check
      _
    $region23: #{tpu_custom_call.1} parent=1 // pred_check_branch
      %59 = sbr.rel (0) target = $region25
    $region24: #{tpu_custom_call.1} parent=1 // pred_region
      %s61 = ssub.s32 256, 256
      %62 = vsyncadd [#allocation5], %s61
      %s63 = sshll.u32 [#allocation8], 4
      %s64 = int_to_ptr.vmem [resolvable:$true] %s63
      %69 = dma.vmem_to_hbm [thread:$0]  %s64, 256, %s3, [#allocation5], 128, 128, 8
    $region25: #{tpu_custom_call.1} parent=1 // pred_fallthru
      _
    // Predicated region
    $region26: #{tpu_custom_call.1} parent=1 // pred_check
      _
    $region27: #{tpu_custom_call.1} parent=1 // pred_check_branch
      %71 = sbr.rel (0) target = $region29
    $region28: #{tpu_custom_call.1} parent=1 // pred_region
      %72 = dma.done [#allocation5], 256
    $region29: #{tpu_custom_call.1} parent=1 // pred_fallthru
      _
    %73 = vsyncpa [#allocation4], 1
    %74 = vsyncpa [#allocation7], 1
    %75 = vsyncpa [#allocation5], 1

</llo_original>
